<compile_context>
chip_gen: v7x
topology: tpu7x:2x2x1
jax: 0.10.0
libtpu: 0.0.40
codegen_flags: <defaults>
</compile_context>

<pallas_src>
import functools

import jax
import jax.numpy as jnp
from jax.experimental import pallas as pl
from jax.experimental.pallas import tpu as pltpu

LN_EPS = 1e-5            # PyTorch nn.LayerNorm default
_LANE = 128
_VMEM_BUDGET = 48 * 1024 * 1024   # fits v7x (64 MiB VMEM) with headroom; fine on v5e/v6e
_MAX_K_RESIDENT = 4096            # above this, stream x / w1 along a K grid axis
_K_TILE = 2048                    # K tile width when streaming (multiple of 128)


def _round_up(x, m):
    return (x + m - 1) // m * m


def _pad_2d(a, rows, cols):
    pr, pc = rows - a.shape[0], cols - a.shape[1]
    if pr == 0 and pc == 0:
        return a
    return jnp.pad(a, ((0, pr), (0, pc)))


def _masked_layer_norm(h, gamma, beta, true_n):
    """LayerNorm over the last axis where only the first `true_n` columns are
    valid and the padded tail of `h` is exactly zero (guaranteed by zero-padded
    weights / biases).  sum / true_n makes the zero padding neutral for the
    statistics; padded gamma/beta are zero so padded outputs stay zero."""
    inv_n = 1.0 / float(true_n)
    mean = jnp.sum(h, axis=-1, keepdims=True) * inv_n
    ex2 = jnp.sum(h * h, axis=-1, keepdims=True) * inv_n
    var = jnp.maximum(ex2 - mean * mean, 0.0)
    inv = jax.lax.rsqrt(var + LN_EPS)
    return (h - mean) * inv * gamma + beta


def _encoder_kernel(x_ref, w1_ref, p1_ref, w2_ref, p2_ref, o_ref, acc_ref,
                    *, hidden_dim, embed_dim):
    """Grid step (i, k): accumulate the K tile of block-1's matmul for row tile i;
    on the last K step run bias -> LN -> ReLU -> Linear2 -> bias -> LN -> ReLU.

    p1_ref / p2_ref pack {bias, ln_gamma, ln_beta} as rows of a (3, N) array.
    Matmuls use bf16 operands on the MXU and accumulate in f32; the LayerNorm /
    ReLU epilogue is f32 end-to-end.  Dropout(p=0) is the identity.
    """
    k = pl.program_id(1)

    @pl.when(k == 0)
    def _init():
        acc_ref[...] = jnp.zeros_like(acc_ref)

    acc_ref[...] += jnp.dot(x_ref[...].astype(jnp.bfloat16), w1_ref[...],
                            preferred_element_type=jnp.float32)

    @pl.when(k == pl.num_programs(1) - 1)
    def _epilogue():
        p1 = p1_ref[...]                     # (3, hidden_p) f32
        p2 = p2_ref[...]                     # (3, embed_p)  f32

        # --- block 1: (Linear done above) + bias -> LayerNorm -> ReLU ---
        h = acc_ref[...] + p1[0:1, :]
        h = _masked_layer_norm(h, p1[1:2, :], p1[2:3, :], hidden_dim)
        h = jnp.maximum(h, 0.0)

        # --- block 2: Linear -> LayerNorm -> ReLU ---
        e = jnp.dot(h.astype(jnp.bfloat16), w2_ref[...],
                    preferred_element_type=jnp.float32)
        e = e + p2[0:1, :]
        e = _masked_layer_norm(e, p2[1:2, :], p2[2:3, :], embed_dim)
        e = jnp.maximum(e, 0.0)

        o_ref[...] = e.astype(o_ref.dtype)


@functools.partial(jax.jit, static_argnames=("block_rows", "out_dtype"))
def ortholog_metric_forward(inp, params, block_rows=512, out_dtype=jnp.float32):
    """inp: (B, input_dim) float32 or bfloat16.  params: dict (see init_params)."""
    B, input_dim = inp.shape
    hidden_dim = params["w1"].shape[1]
    embed_dim = params["w2"].shape[1]

    # Lane-dense padded widths (multiples of 128).
    hidden_p = _round_up(hidden_dim, _LANE)
    embed_p = _round_up(embed_dim, _LANE)

    # K (feature) tiling: resident for small/medium input_dim, streamed otherwise.
    if input_dim <= _MAX_K_RESIDENT:
        bk, Kp = input_dim, input_dim
    else:
        bk = _K_TILE
        Kp = _round_up(input_dim, bk)
    k_tiles = Kp // bk

    x_bytes = jnp.dtype(inp.dtype).itemsize
    o_bytes = jnp.dtype(out_dtype).itemsize

    # --- VMEM-budgeted row tile size -------------------------------------
    w1_blk_bytes = (2 if k_tiles > 1 else 1) * bk * hidden_p * 2        # bf16
    static_bytes = (w1_blk_bytes
                    + hidden_p * embed_p * 2                            # w2 (1 buffer)
                    + 3 * (hidden_p + embed_p) * 4)                     # p1/p2 (1 buffer)
    per_row_bytes = (2 * bk * x_bytes          # x tile, double buffered
                     + 2 * embed_p * o_bytes   # out tile, double buffered
                     + hidden_p * 4            # f32 accumulator scratch
                     + hidden_p * 6            # epilogue h (f32 + bf16 copies)
                     + embed_p * 4)            # epilogue e (f32)
    budget_rows = max(8, (_VMEM_BUDGET - static_bytes) // per_row_bytes)

    b8 = _round_up(B, 8)
    bm = min(block_rows, budget_rows, b8)
    bm = max(8, (bm // 8) * 8)
    # v7x has 2 TensorCores: keep >= 2 row-grid steps whenever the batch allows,
    # so the "parallel" axis can shard across them (no effect on v5e/v6e).
    if b8 >= 16 and (b8 + bm - 1) // bm < 2:
        bm = max(8, _round_up((b8 + 1) // 2, 8))

    Bp = _round_up(B, bm)
    footprint = static_bytes + bm * per_row_bytes
    vmem_limit = int(min(64 << 20, max(32 << 20, int(footprint * 1.25) + (2 << 20))))

    # --- operand prep ------------------------------------------------------
    # Batch padded to whole tiles; feature axis padded only in the streamed-K
    # case.  Padded rows flow harmlessly through LN and are sliced off.
    if Bp != B or Kp != input_dim:
        inp = jnp.pad(inp, ((0, Bp - B), (0, Kp - input_dim)))

    # One-time bf16 cast of the matmul weights (halves weight DMA bytes); zero
    # padding of weights / bias / gamma / beta keeps the padded lanes exactly 0.
    w1 = _pad_2d(params["w1"], Kp, hidden_p).astype(jnp.bfloat16)
    w2 = _pad_2d(params["w2"], hidden_p, embed_p).astype(jnp.bfloat16)
    p1 = _pad_2d(jnp.concatenate([params["b1"], params["g1"], params["be1"]], 0),
                 3, hidden_p)
    p2 = _pad_2d(jnp.concatenate([params["b2"], params["g2"], params["be2"]], 0),
                 3, embed_p)

    grid = (Bp // bm, k_tiles)

    def resident(shape):
        return pl.BlockSpec(shape, lambda i, k: (0, 0),
                            pipeline_mode=pl.Buffered(1))

    if k_tiles == 1:
        w1_spec = pl.BlockSpec((bk, hidden_p), lambda i, k: (k, 0),
                               pipeline_mode=pl.Buffered(1))
    else:
        w1_spec = pl.BlockSpec((bk, hidden_p), lambda i, k: (k, 0))

    kernel = functools.partial(_encoder_kernel,
                               hidden_dim=hidden_dim, embed_dim=embed_dim)

    out = pl.pallas_call(
        kernel,
        out_shape=jax.ShapeDtypeStruct((Bp, embed_p), out_dtype),
        grid_spec=pltpu.PrefetchScalarGridSpec(
            num_scalar_prefetch=0,
            grid=grid,
            in_specs=[
                pl.BlockSpec((bm, bk), lambda i, k: (i, k)),   # x row/K tile
                w1_spec,                                       # w1 (bf16) K tile
                resident((3, hidden_p)),                       # b1/gamma1/beta1
                resident((hidden_p, embed_p)),                 # w2 (bf16)
                resident((3, embed_p)),                        # b2/gamma2/beta2
            ],
            out_specs=pl.BlockSpec((bm, embed_p), lambda i, k: (i, 0)),
            scratch_shapes=[pltpu.VMEM((bm, hidden_p), jnp.float32)],
        ),
        compiler_params=pltpu.CompilerParams(
            dimension_semantics=("parallel", "arbitrary"),
            vmem_limit_bytes=vmem_limit),
    )(inp, w1, p1, w2, p2)

    return out[:B, :embed_dim]


def init_params(key, input_dim, hidden_dim, embed_dim):
    """Deterministic synthetic init (PyTorch-style uniform bounds for Linear;
    LayerNorm gamma=1, beta=0).  Weights stored as (in, out) == W.T."""
    k1, k2, k3, k4 = jax.random.split(key, 4)
    bound1 = 1.0 / jnp.sqrt(input_dim)
    bound2 = 1.0 / jnp.sqrt(hidden_dim)
    return {
        "w1": jax.random.uniform(k1, (input_dim, hidden_dim), jnp.float32,
                                 -bound1, bound1),
        "b1": jax.random.uniform(k2, (1, hidden_dim), jnp.float32,
                                 -bound1, bound1),
        "g1": jnp.ones((1, hidden_dim), jnp.float32),
        "be1": jnp.zeros((1, hidden_dim), jnp.float32),
        "w2": jax.random.uniform(k3, (hidden_dim, embed_dim), jnp.float32,
                                 -bound2, bound2),
        "b2": jax.random.uniform(k4, (1, embed_dim), jnp.float32,
                                 -bound2, bound2),
        "g2": jnp.ones((1, embed_dim), jnp.float32),
        "be2": jnp.zeros((1, embed_dim), jnp.float32),
    }


def reference_forward(inp, params):
    """Pure-JAX f32 reference mirroring the PyTorch module semantics."""
    def ln(h, g, b):
        mean = jnp.mean(h, axis=-1, keepdims=True)
        var = jnp.mean((h - mean) ** 2, axis=-1, keepdims=True)
        return (h - mean) * jax.lax.rsqrt(var + LN_EPS) * g + b

    h = jnp.maximum(ln(inp @ params["w1"] + params["b1"],
                       params["g1"], params["be1"]), 0.0)
    e = jnp.maximum(ln(h @ params["w2"] + params["b2"],
                       params["g2"], params["be2"]), 0.0)
    return e


if __name__ == "__main__":
    # Small, module-consistent shapes.  B=50 (not a multiple of 8) exercises the
    # batch-padding path; block_rows=16 forces a multi-step row grid; hidden/embed
    # = 32 exercise the 128-lane padding + masked-LayerNorm path.
    B, INPUT_DIM, HIDDEN_DIM, EMBED_DIM = 50, 64, 32, 32

    key = jax.random.PRNGKey(0)
    k_x, k_p = jax.random.split(key)
    x = jax.random.normal(k_x, (B, INPUT_DIM), jnp.float32)
    params = init_params(k_p, INPUT_DIM, HIDDEN_DIM, EMBED_DIM)
    # `species` argument of the PyTorch forward is unused in the forward path.
    # TODO(synk): training-mode Dropout (p > 0) is not implemented; module default p=0 -> identity.

    out = ortholog_metric_forward(x, params, block_rows=16)
    out = jax.block_until_ready(out)

    ref = reference_forward(x, params)
    assert out.shape == (B, EMBED_DIM)
    # bf16 MXU operands (f32 accumulation / f32 LayerNorm) -> loosened tolerance;
    # this is a deliberate precision choice for a metric/embedding model.
    assert jnp.allclose(out, ref, atol=5e-2, rtol=5e-2), "mismatch vs reference"

    print("KERNEL_OK")
</pallas_src>

<mosaic_0001>
module attributes {stable_mosaic.version = 11 : i64} {
  func.func @_encoder_kernel(%arg0: i32, %arg1: i32, %arg2: memref<16x64xf32, #tpu.memory_space<vmem>>, %arg3: memref<64x128xbf16, #tpu.memory_space<vmem>>, %arg4: memref<3x128xf32, #tpu.memory_space<vmem>>, %arg5: memref<128x128xbf16, #tpu.memory_space<vmem>>, %arg6: memref<3x128xf32, #tpu.memory_space<vmem>>, %arg7: memref<16x128xf32, #tpu.memory_space<vmem>>, %arg8: memref<16x128xf32, #tpu.memory_space<vmem>>) attributes {dimension_semantics = [#tpu.dimension_semantics<parallel>, #tpu.dimension_semantics<arbitrary>], iteration_bounds = array<i64: 4, 1>, scalar_prefetch = 0 : i64, scratch_operands = 1 : i64, tpu.core_type = #tpu.core_type<tc>, window_params = [{transform_indices = @transform_0, window_bounds = array<i64: 16, 64>}, {pipeline_mode = #tpu.pipeline_mode<synchronous>, transform_indices = @transform_1, window_bounds = array<i64: 64, 128>}, {pipeline_mode = #tpu.pipeline_mode<synchronous>, transform_indices = @transform_2, window_bounds = array<i64: 3, 128>}, {pipeline_mode = #tpu.pipeline_mode<synchronous>, transform_indices = @transform_3, window_bounds = array<i64: 128, 128>}, {pipeline_mode = #tpu.pipeline_mode<synchronous>, transform_indices = @transform_4, window_bounds = array<i64: 3, 128>}, {transform_indices = @transform_5, window_bounds = array<i64: 16, 128>}]} {
    %c0_i32 = arith.constant 0 : i32
    %0 = arith.cmpi eq, %arg1, %c0_i32 : i32
    %1 = arith.extui %0 : i1 to i32
    %c0_i32_0 = arith.constant 0 : i32
    %2 = arith.cmpi ne, %1, %c0_i32_0 : i32
    scf.if %2 {
      %cst_10 = arith.constant 0.000000e+00 : f32
      %13 = vector.broadcast %cst_10 : f32 to vector<16x128xf32>
      %c0_11 = arith.constant 0 : index
      %c0_12 = arith.constant 0 : index
      %14 = vector.load %arg8[%c0_11, %c0_12] : memref<16x128xf32, #tpu.memory_space<vmem>>, vector<16x128xf32>
      tpu.vector_store %arg8[%c0_11, %c0_12], %13 {strides = array<i32>} : memref<16x128xf32, #tpu.memory_space<vmem>>, vector<16x128xf32>,
    } else {
    }
    %c0 = arith.constant 0 : index
    %c0_1 = arith.constant 0 : index
    %3 = vector.load %arg8[%c0, %c0_1] : memref<16x128xf32, #tpu.memory_space<vmem>>, vector<16x128xf32>
    %c0_2 = arith.constant 0 : index
    %c0_3 = arith.constant 0 : index
    %4 = vector.load %arg2[%c0_2, %c0_3] : memref<16x64xf32, #tpu.memory_space<vmem>>, vector<16x64xf32>
    %5 = arith.truncf %4 : vector<16x64xf32> to vector<16x64xbf16>
    %c0_4 = arith.constant 0 : index
    %c0_5 = arith.constant 0 : index
    %6 = vector.load %arg3[%c0_4, %c0_5] : memref<64x128xbf16, #tpu.memory_space<vmem>>, vector<64x128xbf16>
    %cst = arith.constant dense<0.000000e+00> : vector<16x128xf32>
    %7 = tpu.matmul %5, %6, %cst {dimension_numbers = #tpu.dot_dimension_numbers<[1], [0], [0], [1], [0, 0, 1, 1], [], []>} : vector<16x64xbf16>, vector<64x128xbf16>, vector<16x128xf32> -> vector<16x128xf32>
    %8 = arith.addf %3, %7 : vector<16x128xf32>
    %c0_6 = arith.constant 0 : index
    %c0_7 = arith.constant 0 : index
    %9 = vector.load %arg8[%c0_6, %c0_7] : memref<16x128xf32, #tpu.memory_space<vmem>>, vector<16x128xf32>
    tpu.vector_store %arg8[%c0_6, %c0_7], %8 {strides = array<i32>} : memref<16x128xf32, #tpu.memory_space<vmem>>, vector<16x128xf32>,
    %c0_i32_8 = arith.constant 0 : i32
    %10 = arith.cmpi eq, %arg1, %c0_i32_8 : i32
    %11 = arith.extui %10 : i1 to i32
    %c0_i32_9 = arith.constant 0 : i32
    %12 = arith.cmpi ne, %11, %c0_i32_9 : i32
    scf.if %12 {
      %c0_10 = arith.constant 0 : index
      %c0_11 = arith.constant 0 : index
      %13 = vector.load %arg4[%c0_10, %c0_11] : memref<3x128xf32, #tpu.memory_space<vmem>>, vector<3x128xf32>
      %c0_12 = arith.constant 0 : index
      %c0_13 = arith.constant 0 : index
      %14 = vector.load %arg6[%c0_12, %c0_13] : memref<3x128xf32, #tpu.memory_space<vmem>>, vector<3x128xf32>
      %c0_14 = arith.constant 0 : index
      %c0_15 = arith.constant 0 : index
      %15 = vector.load %arg8[%c0_14, %c0_15] : memref<16x128xf32, #tpu.memory_space<vmem>>, vector<16x128xf32>
      %16 = vector.extract_strided_slice %13 {offsets = [0, 0], sizes = [1, 128], strides = [1, 1]} : vector<3x128xf32> to vector<1x128xf32>
      %17 = vector.broadcast %16 : vector<1x128xf32> to vector<16x128xf32>
      %18 = arith.addf %15, %17 : vector<16x128xf32>
      %19 = vector.extract_strided_slice %13 {offsets = [1, 0], sizes = [1, 128], strides = [1, 1]} : vector<3x128xf32> to vector<1x128xf32>
      %20 = vector.extract_strided_slice %13 {offsets = [2, 0], sizes = [1, 128], strides = [1, 1]} : vector<3x128xf32> to vector<1x128xf32>
      %cst_16 = arith.constant dense<0.000000e+00> : vector<16xf32>
      %21 = vector.multi_reduction <add>, %18, %cst_16 [1] : vector<16x128xf32> to vector<16xf32>
      %22 = vector.shape_cast %21 : vector<16xf32> to vector<16x1xf32>
      %cst_17 = arith.constant 3.125000e-02 : f32
      %23 = vector.broadcast %cst_17 : f32 to vector<16x1xf32>
      %24 = arith.mulf %22, %23 : vector<16x1xf32>
      %25 = arith.mulf %18, %18 : vector<16x128xf32>
      %cst_18 = arith.constant dense<0.000000e+00> : vector<16xf32>
      %26 = vector.multi_reduction <add>, %25, %cst_18 [1] : vector<16x128xf32> to vector<16xf32>
      %27 = vector.shape_cast %26 : vector<16xf32> to vector<16x1xf32>
      %cst_19 = arith.constant 3.125000e-02 : f32
      %28 = vector.broadcast %cst_19 : f32 to vector<16x1xf32>
      %29 = arith.mulf %27, %28 : vector<16x1xf32>
      %30 = arith.mulf %24, %24 : vector<16x1xf32>
      %31 = arith.subf %29, %30 : vector<16x1xf32>
      %cst_20 = arith.constant 0.000000e+00 : f32
      %32 = vector.broadcast %cst_20 : f32 to vector<16x1xf32>
      %33 = arith.maximumf %31, %32 : vector<16x1xf32>
      %cst_21 = arith.constant 9.99999974E-6 : f32
      %34 = vector.broadcast %cst_21 : f32 to vector<16x1xf32>
      %35 = arith.addf %33, %34 : vector<16x1xf32>
      %36 = math.rsqrt %35 : vector<16x1xf32>
      %37 = vector.broadcast %24 : vector<16x1xf32> to vector<16x128xf32>
      %38 = arith.subf %18, %37 : vector<16x128xf32>
      %39 = vector.broadcast %36 : vector<16x1xf32> to vector<16x128xf32>
      %40 = arith.mulf %38, %39 : vector<16x128xf32>
      %41 = vector.broadcast %19 : vector<1x128xf32> to vector<16x128xf32>
      %42 = arith.mulf %40, %41 : vector<16x128xf32>
      %43 = vector.broadcast %20 : vector<1x128xf32> to vector<16x128xf32>
      %44 = arith.addf %42, %43 : vector<16x128xf32>
      %cst_22 = arith.constant 0.000000e+00 : f32
      %45 = vector.broadcast %cst_22 : f32 to vector<16x128xf32>
      %46 = arith.maximumf %44, %45 : vector<16x128xf32>
      %47 = arith.truncf %46 : vector<16x128xf32> to vector<16x128xbf16>
      %c0_23 = arith.constant 0 : index
      %c0_24 = arith.constant 0 : index
      %48 = vector.load %arg5[%c0_23, %c0_24] : memref<128x128xbf16, #tpu.memory_space<vmem>>, vector<128x128xbf16>
      %cst_25 = arith.constant dense<0.000000e+00> : vector<16x128xf32>
      %49 = tpu.matmul %47, %48, %cst_25 {dimension_numbers = #tpu.dot_dimension_numbers<[1], [0], [0], [1], [0, 0, 1, 1], [], []>} : vector<16x128xbf16>, vector<128x128xbf16>, vector<16x128xf32> -> vector<16x128xf32>
      %50 = vector.extract_strided_slice %14 {offsets = [0, 0], sizes = [1, 128], strides = [1, 1]} : vector<3x128xf32> to vector<1x128xf32>
      %51 = vector.broadcast %50 : vector<1x128xf32> to vector<16x128xf32>
      %52 = arith.addf %49, %51 : vector<16x128xf32>
      %53 = vector.extract_strided_slice %14 {offsets = [1, 0], sizes = [1, 128], strides = [1, 1]} : vector<3x128xf32> to vector<1x128xf32>
      %54 = vector.extract_strided_slice %14 {offsets = [2, 0], sizes = [1, 128], strides = [1, 1]} : vector<3x128xf32> to vector<1x128xf32>
      %cst_26 = arith.constant dense<0.000000e+00> : vector<16xf32>
      %55 = vector.multi_reduction <add>, %52, %cst_26 [1] : vector<16x128xf32> to vector<16xf32>
      %56 = vector.shape_cast %55 : vector<16xf32> to vector<16x1xf32>
      %cst_27 = arith.constant 3.125000e-02 : f32
      %57 = vector.broadcast %cst_27 : f32 to vector<16x1xf32>
      %58 = arith.mulf %56, %57 : vector<16x1xf32>
      %59 = arith.mulf %52, %52 : vector<16x128xf32>
      %cst_28 = arith.constant dense<0.000000e+00> : vector<16xf32>
      %60 = vector.multi_reduction <add>, %59, %cst_28 [1] : vector<16x128xf32> to vector<16xf32>
      %61 = vector.shape_cast %60 : vector<16xf32> to vector<16x1xf32>
      %cst_29 = arith.constant 3.125000e-02 : f32
      %62 = vector.broadcast %cst_29 : f32 to vector<16x1xf32>
      %63 = arith.mulf %61, %62 : vector<16x1xf32>
      %64 = arith.mulf %58, %58 : vector<16x1xf32>
      %65 = arith.subf %63, %64 : vector<16x1xf32>
      %cst_30 = arith.constant 0.000000e+00 : f32
      %66 = vector.broadcast %cst_30 : f32 to vector<16x1xf32>
      %67 = arith.maximumf %65, %66 : vector<16x1xf32>
      %cst_31 = arith.constant 9.99999974E-6 : f32
      %68 = vector.broadcast %cst_31 : f32 to vector<16x1xf32>
      %69 = arith.addf %67, %68 : vector<16x1xf32>
      %70 = math.rsqrt %69 : vector<16x1xf32>
      %71 = vector.broadcast %58 : vector<16x1xf32> to vector<16x128xf32>
      %72 = arith.subf %52, %71 : vector<16x128xf32>
      %73 = vector.broadcast %70 : vector<16x1xf32> to vector<16x128xf32>
      %74 = arith.mulf %72, %73 : vector<16x128xf32>
      %75 = vector.broadcast %53 : vector<1x128xf32> to vector<16x128xf32>
      %76 = arith.mulf %74, %75 : vector<16x128xf32>
      %77 = vector.broadcast %54 : vector<1x128xf32> to vector<16x128xf32>
      %78 = arith.addf %76, %77 : vector<16x128xf32>
      %cst_32 = arith.constant 0.000000e+00 : f32
      %79 = vector.broadcast %cst_32 : f32 to vector<16x128xf32>
      %80 = arith.maximumf %78, %79 : vector<16x128xf32>
      %c0_33 = arith.constant 0 : index
      %c0_34 = arith.constant 0 : index
      %81 = vector.load %arg7[%c0_33, %c0_34] : memref<16x128xf32, #tpu.memory_space<vmem>>, vector<16x128xf32>
      tpu.vector_store %arg7[%c0_33, %c0_34], %80 {strides = array<i32>} : memref<16x128xf32, #tpu.memory_space<vmem>>, vector<16x128xf32>,
    } else {
    }
    return
  }
  func.func @transform_0(%arg0: i32, %arg1: i32) -> (i32, i32) {
    %c0_i32 = arith.constant 0 : i32
    return %arg0, %arg1 : i32, i32
  }
  func.func @transform_1(%arg0: i32, %arg1: i32) -> (i32, i32) {
    %c0_i32 = arith.constant 0 : i32
    %c0_i32_0 = arith.constant 0 : i32
    return %arg1, %c0_i32 : i32, i32
  }
  func.func @transform_2(%arg0: i32, %arg1: i32) -> (i32, i32) {
    %c0_i32 = arith.constant 0 : i32
    %c0_i32_0 = arith.constant 0 : i32
    %c0_i32_1 = arith.constant 0 : i32
    return %c0_i32, %c0_i32_0 : i32, i32
  }
  func.func @transform_3(%arg0: i32, %arg1: i32) -> (i32, i32) {
    %c0_i32 = arith.constant 0 : i32
    %c0_i32_0 = arith.constant 0 : i32
    %c0_i32_1 = arith.constant 0 : i32
    return %c0_i32, %c0_i32_0 : i32, i32
  }
  func.func @transform_4(%arg0: i32, %arg1: i32) -> (i32, i32) {
    %c0_i32 = arith.constant 0 : i32
    %c0_i32_0 = arith.constant 0 : i32
    %c0_i32_1 = arith.constant 0 : i32
    return %c0_i32, %c0_i32_0 : i32, i32
  }
  func.func @transform_5(%arg0: i32, %arg1: i32) -> (i32, i32) {
    %c0_i32 = arith.constant 0 : i32
    %c0_i32_0 = arith.constant 0 : i32
    return %arg0, %c0_i32 : i32, i32
  }
}

</mosaic_0001>

<llo_original>
// kernel: ortholog_metric_forward.1
$region0: #{ortholog_metric_forward.1}
  #allocation0 [shape = 'u32[]', space=smem, size = 0x4, offset = 0x4, fixed_abs, tag = 'smem constant byte address 0x4 - core index']
  #allocation1 [shape = 'u32[144,128]{1,0:T(1,128)}', space=vmem, size = 0x12000, scoped, tag = 'internal scratch']
  #allocation2 [shape = 'f32[16,128]{1,0:T(8,128)}', space=vmem, size = 0x2000, scoped, tag = 'scratch operand']
  %s0 = inlined_call_operand.vmem [shape: f32[64,64], index: 0, kind: input, shape index: {}]
  %s1 = inlined_call_operand.vmem [shape: bf16[64,128], index: 1, kind: input, shape index: {}]
  %s2 = inlined_call_operand.vmem [shape: f32[3,128], index: 2, kind: input, shape index: {}]
  %s3 = inlined_call_operand.vmem [shape: bf16[128,128], index: 3, kind: input, shape index: {}]
  %s4 = inlined_call_operand.vmem [shape: f32[3,128], index: 4, kind: input, shape index: {}]
  %s5 = inlined_call_operand.vmem [shape: f32[64,128], index: 5, kind: output, shape index: {}]
  %s6 = sld [smem:[#allocation0]]
  $region61: #{ortholog_metric_forward.1} parent=0
    _
  %s8 = ssub.s32 1, %s6
  %s9 = scalar_select 0, %s8, %s6
  loop: start=0, step=1, limit=6
  $region2: #{ortholog_metric_forward.1} parent=0 // loop_pre_header
    _
  $region3: #{ortholog_metric_forward.1} parent=0 // loop_header
    %s11 = sphi 0, %s15
    %p12 = scmp.ge.s32.totalorder %s11, 6
    %s18 = sphi 0, %s30
    %s19 = sphi 0, %s26
    %s20 = sphi 0, %s18
    %s21 = sphi 0, %s19
    %s22 = sphi 0, %s20
    %s23 = sphi 0, %s21
    %s35 = sphi 0, %s37
    %s38 = sphi 0, %s35
    %s39 = sphi 0, %s38
    %s55 = sphi 0, %s39
    %s61 = sphi 0, %s63
    %s64 = sphi 0, %s61
    %s65 = sphi 0, %s64
    %s81 = sphi 0, %s65
    %s85 = sphi 0, %s85
    %s87 = sphi 0, %s85
    %s88 = sphi 0, %s87
    %s102 = sphi 0, %s88
    %s106 = sphi 0, %s106
    %s108 = sphi 0, %s106
    %s109 = sphi 0, %s108
    %s123 = sphi 0, %s109
    %s127 = sphi 0, %s127
    %s129 = sphi 0, %s127
    %s130 = sphi 0, %s129
    %s144 = sphi 0, %s130
    %s150 = sphi 0, %s152
    %s153 = sphi 0, %s150
    %s154 = sphi 0, %s153
    %s170 = sphi 0, %s154
  $region4: #{ortholog_metric_forward.1} parent=0 // loop_header_branch
    %14 = sbr.rel (%p12) target = $region8
  $region5: #{ortholog_metric_forward.1} parent=0 // loop_body
    %s16 = ssub.s32 %s11, 1
    %s17 = ssub.s32 %s11, 2
    %s24 = sadd.s32 1, %s19
    %p25 = scmp.ge.s32.totalorder %s24, 1
    %s26 = scalar_select %p25, 0, %s24
    %s27 = sadd.s32 1, %s18
    %s28 = scalar_select %p25, %s27, %s18
    %p29 = scmp.ge.s32.totalorder %s28, 4
    %s30 = scalar_select %p29, 0, %s28
    %s31 = ssub.s32 %s18, %s30
    %s32 = ssub.s32 %s19, %s26
    %s33 = sor.u32 %s31, %s32
    %p34 = scmp.eq.s32.totalorder %s33, 0
    %s36 = sadd.s32 %s35, 1
    %s37 = scalar_select %p34, %s35, %s36
    %p40 = pneg %p34
    %p41 = scmp.eq.s32.totalorder %s11, 3
    %p42 = por %p40, %p41
    %p43 = scmp.ne.s32.totalorder %s35, %s38
    %p44 = scmp.eq.s32.totalorder %s11, 0
    %p45 = por %p43, %p44
    %p46 = scmp.ne.s32.totalorder %s35, %s38
    %p47 = scmp.eq.s32.totalorder %s16, 3
    %p48 = por %p46, %p47
    %p49 = scmp.ne.s32.totalorder %s38, %s39
    %p50 = scmp.eq.s32.totalorder %s16, 0
    %p51 = por %p49, %p50
    %p52 = scmp.ne.s32.totalorder %s38, %s39
    %p53 = scmp.eq.s32.totalorder %s17, 3
    %p54 = por %p52, %p53
    %p56 = scmp.ne.s32.totalorder %s39, %s55
    %p57 = scmp.eq.s32.totalorder %s17, 0
    %p58 = por %p56, %p57
    %s59 = ssub.s32 %s19, %s26
    %p60 = scmp.eq.s32.totalorder %s59, 0
    %s62 = sadd.s32 %s61, 1
    %s63 = scalar_select %p60, %s61, %s62
    %p66 = pneg %p60
    %p67 = scmp.eq.s32.totalorder %s11, 3
    %p68 = por %p66, %p67
    %p69 = scmp.ne.s32.totalorder %s61, %s64
    %p70 = scmp.eq.s32.totalorder %s11, 0
    %p71 = por %p69, %p70
    %p72 = scmp.ne.s32.totalorder %s61, %s64
    %p73 = scmp.eq.s32.totalorder %s16, 3
    %p74 = por %p72, %p73
    %p75 = scmp.ne.s32.totalorder %s64, %s65
    %p76 = scmp.eq.s32.totalorder %s16, 0
    %p77 = por %p75, %p76
    %p78 = scmp.ne.s32.totalorder %s64, %s65
    %p79 = scmp.eq.s32.totalorder %s17, 3
    %p80 = por %p78, %p79
    %p82 = scmp.ne.s32.totalorder %s65, %s81
    %p83 = scmp.eq.s32.totalorder %s17, 0
    %p84 = por %p82, %p83
    %s86 = sadd.s32 %s85, 1
    %p89 = scmp.eq.s32.totalorder %s11, 3
    %p90 = scmp.ne.s32.totalorder %s85, %s87
    %p91 = scmp.eq.s32.totalorder %s11, 0
    %p92 = por %p90, %p91
    %p93 = scmp.ne.s32.totalorder %s85, %s87
    %p94 = scmp.eq.s32.totalorder %s16, 3
    %p95 = por %p93, %p94
    %p96 = scmp.ne.s32.totalorder %s87, %s88
    %p97 = scmp.eq.s32.totalorder %s16, 0
    %p98 = por %p96, %p97
    %p99 = scmp.ne.s32.totalorder %s87, %s88
    %p100 = scmp.eq.s32.totalorder %s17, 3
    %p101 = por %p99, %p100
    %p103 = scmp.ne.s32.totalorder %s88, %s102
    %p104 = scmp.eq.s32.totalorder %s17, 0
    %p105 = por %p103, %p104
    %s107 = sadd.s32 %s106, 1
    %p110 = scmp.eq.s32.totalorder %s11, 3
    %p111 = scmp.ne.s32.totalorder %s106, %s108
    %p112 = scmp.eq.s32.totalorder %s11, 0
    %p113 = por %p111, %p112
    %p114 = scmp.ne.s32.totalorder %s106, %s108
    %p115 = scmp.eq.s32.totalorder %s16, 3
    %p116 = por %p114, %p115
    %p117 = scmp.ne.s32.totalorder %s108, %s109
    %p118 = scmp.eq.s32.totalorder %s16, 0
    %p119 = por %p117, %p118
    %p120 = scmp.ne.s32.totalorder %s108, %s109
    %p121 = scmp.eq.s32.totalorder %s17, 3
    %p122 = por %p120, %p121
    %p124 = scmp.ne.s32.totalorder %s109, %s123
    %p125 = scmp.eq.s32.totalorder %s17, 0
    %p126 = por %p124, %p125
    %s128 = sadd.s32 %s127, 1
    %p131 = scmp.eq.s32.totalorder %s11, 3
    %p132 = scmp.ne.s32.totalorder %s127, %s129
    %p133 = scmp.eq.s32.totalorder %s11, 0
    %p134 = por %p132, %p133
    %p135 = scmp.ne.s32.totalorder %s127, %s129
    %p136 = scmp.eq.s32.totalorder %s16, 3
    %p137 = por %p135, %p136
    %p138 = scmp.ne.s32.totalorder %s129, %s130
    %p139 = scmp.eq.s32.totalorder %s16, 0
    %p140 = por %p138, %p139
    %p141 = scmp.ne.s32.totalorder %s129, %s130
    %p142 = scmp.eq.s32.totalorder %s17, 3
    %p143 = por %p141, %p142
    %p145 = scmp.ne.s32.totalorder %s130, %s144
    %p146 = scmp.eq.s32.totalorder %s17, 0
    %p147 = por %p145, %p146
    %s148 = ssub.s32 %s18, %s30
    %p149 = scmp.eq.s32.totalorder %s148, 0
    %s151 = sadd.s32 %s150, 1
    %s152 = scalar_select %p149, %s150, %s151
    %p155 = pneg %p149
    %p156 = scmp.eq.s32.totalorder %s11, 3
    %p157 = por %p155, %p156
    %p158 = scmp.ne.s32.totalorder %s150, %s153
    %p159 = scmp.eq.s32.totalorder %s11, 0
    %p160 = por %p158, %p159
    %p161 = scmp.ne.s32.totalorder %s150, %s153
    %p162 = scmp.eq.s32.totalorder %s16, 3
    %p163 = por %p161, %p162
    %p164 = scmp.ne.s32.totalorder %s153, %s154
    %p165 = scmp.eq.s32.totalorder %s16, 0
    %p166 = por %p164, %p165
    %p167 = scmp.ne.s32.totalorder %s153, %s154
    %p168 = scmp.eq.s32.totalorder %s17, 3
    %p169 = por %p167, %p168
    %p171 = scmp.ne.s32.totalorder %s154, %s170
    %p172 = scmp.eq.s32.totalorder %s17, 0
    %p173 = por %p171, %p172
    %p174 = scmp.le.s32.totalorder 1, %s11
    %p175 = scmp.lt.s32.totalorder %s11, 5
    %p176 = pnand %p174, %p175
    %p177 = pneg %p176
    // Predicated region
    $region9: #{ortholog_metric_forward.1} parent=5 // pred_check
      _
    $region10: #{ortholog_metric_forward.1} parent=5 // pred_check_branch
      %179 = sbr.rel (%p176) target = $region12
    $region11: #{ortholog_metric_forward.1} parent=5 // pred_region
      %s180 = ssub.s32 %s11, 1
      // Predicated region
      $region13: #{ortholog_metric_forward.1} parent=11 // pred_check
        %p181 = pneg %p77
      $region14: #{ortholog_metric_forward.1} parent=11 // pred_check_branch
        %183 = sbr.rel (%p181) target = $region16
      $region15: #{ortholog_metric_forward.1} parent=11 // pred_region
        %s184 = smul.u32 8, %s21
        %p185 = scmp.lt.s32.totalorder %s184, 7
        %s186 = scalar_select %p185, %s184, 7
        %s187 = smul.addr %s186, 4
        %s188 = scalar_lea.vmem %s1, %s187
        %s189 = smul.u32 8, %s21
      $region16: #{ortholog_metric_forward.1} parent=11 // pred_fallthru
        _
      // Predicated region
      $region17: #{ortholog_metric_forward.1} parent=11 // pred_check
        %p190 = pneg %p98
      $region18: #{ortholog_metric_forward.1} parent=11 // pred_check_branch
        %192 = sbr.rel (%p190) target = $region20
      $region19: #{ortholog_metric_forward.1} parent=11 // pred_region
        _
      $region20: #{ortholog_metric_forward.1} parent=11 // pred_fallthru
        _
      // Predicated region
      $region21: #{ortholog_metric_forward.1} parent=11 // pred_check
        %p193 = pneg %p119
      $region22: #{ortholog_metric_forward.1} parent=11 // pred_check_branch
        %195 = sbr.rel (%p193) target = $region24
      $region23: #{ortholog_metric_forward.1} parent=11 // pred_region
        _
      $region24: #{ortholog_metric_forward.1} parent=11 // pred_fallthru
        _
      // Predicated region
      $region25: #{ortholog_metric_forward.1} parent=11 // pred_check
        %p196 = pneg %p140
      $region26: #{ortholog_metric_forward.1} parent=11 // pred_check_branch
        %198 = sbr.rel (%p196) target = $region28
      $region27: #{ortholog_metric_forward.1} parent=11 // pred_region
        _
      $region28: #{ortholog_metric_forward.1} parent=11 // pred_fallthru
        _
    $region12: #{ortholog_metric_forward.1} parent=5 // pred_fallthru
      _
    %p199 = scmp.lt.s32.totalorder %s11, 4
    // Predicated region
    $region29: #{ortholog_metric_forward.1} parent=5 // pred_check
      %p200 = pneg %p199
    $region30: #{ortholog_metric_forward.1} parent=5 // pred_check_branch
      %202 = sbr.rel (%p200) target = $region32
    $region31: #{ortholog_metric_forward.1} parent=5 // pred_region
      // Predicated region
      $region33: #{ortholog_metric_forward.1} parent=31 // pred_check
        %p203 = pneg %p45
      $region34: #{ortholog_metric_forward.1} parent=31 // pred_check_branch
        %205 = sbr.rel (%p203) target = $region36
      $region35: #{ortholog_metric_forward.1} parent=31 // pred_region
        %s206 = smul.u32 2, %s18
        %p207 = scmp.lt.s32.totalorder %s206, 7
        %s208 = scalar_select %p207, %s206, 7
        %p209 = scmp.lt.s32.totalorder %s19, 0
        %s210 = scalar_select %p209, %s19, 0
        %s211 = sadd.s32 %s210, %s208
        %s212 = smul.addr %s211, 8
        %s213 = scalar_lea.vmem %s0, %s212
        %s214 = smul.u32 2, %s18
      $region36: #{ortholog_metric_forward.1} parent=31 // pred_fallthru
        _
    $region32: #{ortholog_metric_forward.1} parent=5 // pred_fallthru
      _
    %p215 = scmp.le.s32.totalorder 1, %s11
    %p216 = scmp.lt.s32.totalorder %s11, 5
    %p217 = pnand %p215, %p216
    %p218 = pneg %p217
    // Predicated region
    $region37: #{ortholog_metric_forward.1} parent=5 // pred_check
      _
    $region38: #{ortholog_metric_forward.1} parent=5 // pred_check_branch
      %220 = sbr.rel (%p217) target = $region40
    $region39: #{ortholog_metric_forward.1} parent=5 // pred_region
      %s221 = ssub.s32 %s11, 1
      %s222 = smul.u32 2, %s20
      %p223 = scmp.lt.s32.totalorder %s222, 7
      %s224 = scalar_select %p223, %s222, 7
      %p225 = scmp.lt.s32.totalorder %s21, 0
      %s226 = scalar_select %p225, %s21, 0
      %s227 = sadd.s32 %s226, %s224
      %s228 = smul.addr %s227, 8
      %s229 = scalar_lea.vmem %s0, %s228
      %p230 = pneg %p51
      %p231 = pneg %p48
      %s232 = smul.u32 8, %s21
      %p233 = scmp.lt.s32.totalorder %s232, 7
      %s234 = scalar_select %p233, %s232, 7
      %s235 = smul.addr %s234, 4
      %s236 = scalar_lea.vmem %s1, %s235
      %p237 = pneg %p77
      %p238 = pneg %p74
      %p239 = pneg %p98
      %p240 = pneg %p95
      %p241 = pneg %p119
      %p242 = pneg %p116
      %p243 = pneg %p140
      %p244 = pneg %p137
      %p245 = pneg %p166
      %p246 = pneg %p163
      %s247 = smul.u32 2, %s20
      %p248 = scmp.lt.s32.totalorder %s247, 7
      %s249 = scalar_select %p248, %s247, 7
      %s250 = smul.addr %s249, 8
      %s251 = scalar_lea.vmem %s5, %s250
      %s252 = smul.u32 2, %s20
      %p253 = scmp.lt.s32.totalorder %s252, 7
      %s254 = scalar_select %p253, %s252, 7
      %p255 = scmp.lt.s32.totalorder %s21, 0
      %s256 = scalar_select %p255, %s21, 0
      %s257 = sadd.s32 %s256, %s254
      %s258 = smul.addr %s257, 8
      %s259 = scalar_lea.vmem %s0, %s258
      %s260 = smul.u32 2, %s20
      %s261 = smul.u32 8, %s21
      %p262 = scmp.lt.s32.totalorder %s261, 7
      %s263 = scalar_select %p262, %s261, 7
      %s264 = smul.addr %s263, 4
      %s265 = scalar_lea.vmem %s1, %s264
      %s266 = smul.u32 8, %s21
      %s267 = smul.u32 2, %s20
      %p268 = scmp.lt.s32.totalorder %s267, 7
      %s269 = scalar_select %p268, %s267, 7
      %s270 = smul.addr %s269, 8
      %s271 = scalar_lea.vmem %s5, %s270
      %s272 = smul.u32 2, %s20
      %p274 = scmp.eq.s32.totalorder %s21, 0
      // Predicated region
      $region41: #{ortholog_metric_forward.1} parent=39 // pred_check
        %p275 = pneg %p274
      $region42: #{ortholog_metric_forward.1} parent=39 // pred_check_branch
        %277 = sbr.rel (%p275) target = $region44
      $region43: #{ortholog_metric_forward.1} parent=39 // pred_region
        %278 = vst [vmem:[#allocation2] sm:$0xff] 0.0
        %279 = vst [vmem:[#allocation2 + $0x8] sm:$0xff] 0.0
      $region44: #{ortholog_metric_forward.1} parent=39 // pred_fallthru
        _
      %v280 = vld [vmem:[#allocation2] sm:$0xff]
      %v281 = vld [vmem:[#allocation2 + $0x8] sm:$0xff]
      %v282 = vld [vmem:[%s259] sm:$0xff]
      %v283 = vld [vmem:[%s259 + $0x8] sm:$0xff]
      %v284 = vpack.c.bf16 %v283, %v282
      %v285 = vld [vmem:[%s265] sm:$0xf]
      %v286 = vld [vmem:[%s265 + $0x4] sm:$0xf]
      %v287 = vld [vmem:[%s265 + $0x8] sm:$0xf]
      %v288 = vld [vmem:[%s265 + $0xc] sm:$0xf]
      %v289 = vld [vmem:[%s265 + $0x10] sm:$0xf]
      %v290 = vld [vmem:[%s265 + $0x14] sm:$0xf]
      %v291 = vld [vmem:[%s265 + $0x18] sm:$0xf]
      %v292 = vld [vmem:[%s265 + $0x1c] sm:$0xf]
      %v301 = vunpack.c.l.b16 %v285
      %v302 = vunpack.c.l.b16 %v286
      %v303 = vunpack.c.l.b16 %v287
      %v304 = vunpack.c.l.b16 %v288
      %v305 = vunpack.c.l.b16 %v289
      %v306 = vunpack.c.l.b16 %v290
      %v307 = vunpack.c.l.b16 %v291
      %v308 = vunpack.c.l.b16 %v292
      %v309 = vpack.c.b16 %v302, %v301
      %v310 = vpack.c.b16 %v304, %v303
      %v311 = vpack.c.b16 %v306, %v305
      %v312 = vpack.c.b16 %v308, %v307
      %vm317 = vcmask 523264
      %v319 = vsel %vm317, %v284, 0
      %321 = vmatprep.subr.bf16.mxu0 0
      %322 = vmatpush1.bf16.msra.mxu0 %v309
      %323 = vmatprep.subr.bf16.mxu0 0
      %324 = vmatpush1.bf16.msra.mxu0 %v310
      %325 = vmatprep.subr.bf16.mxu0 0
      %326 = vmatpush1.bf16.msra.mxu0 %v311
      %327 = vmatprep.subr.bf16.mxu0 0
      %328 = vmatpush1.bf16.msra.mxu0 %v312
      %329 = vmatprep.subr.bf16.mxu0 0
      %330 = vmatpush1.bf16.msra.mxu0 0
      %331 = vmatprep.subr.bf16.mxu0 0
      %332 = vmatpush1.bf16.msra.mxu0 0
      %333 = vmatprep.subr.bf16.mxu0 0
      %334 = vmatpush1.bf16.msra.mxu0 0
      %335 = vmatprep.subr.bf16.mxu0 0
      %336 = vmatpush1.bf16.msra.mxu0 0
      %337 = vmatprep.subr.bf16.mxu0 0
      %338 = vmatpush1.bf16.msra.mxu0 0
      %339 = vmatprep.subr.bf16.mxu0 0
      %340 = vmatpush1.bf16.msra.mxu0 0
      %341 = vmatprep.subr.bf16.mxu0 0
      %342 = vmatpush1.bf16.msra.mxu0 0
      %343 = vmatprep.subr.bf16.mxu0 0
      %344 = vmatpush1.bf16.msra.mxu0 0
      %345 = vmatprep.subr.bf16.mxu0 0
      %346 = vmatpush1.bf16.msra.mxu0 0
      %347 = vmatprep.subr.bf16.mxu0 0
      %348 = vmatpush1.bf16.msra.mxu0 0
      %349 = vmatprep.subr.bf16.mxu0 0
      %350 = vmatpush1.bf16.msra.mxu0 0
      %351 = vmatprep.subr.bf16.mxu0 0
      %352 = vmatpush1.bf16.msra.mxu0 0
      %353 = vmatprep.mubr.bf16.mxu0 0
      %354 = vmatmul.mubr.bf16.gmra.mrb[0].mxu0 %v319
      %v355 = vpop.f32.mrb[0].mxu0
      %v356 = vadd.f32 0.0, %v355
      %v357 = vpop.f32.mrb[0].mxu0
      %v358 = vpop.f32.mrb[0].mxu0
      %v359 = vadd.f32 0.0, %v358
      %v360 = vpop.f32.mrb[0].mxu0
      %361 = vdwg.mxu0
      %v362 = vadd.f32 %v280, %v356
      %v363 = vadd.f32 %v281, %v359
      %364 = vst [vmem:[#allocation2] sm:$0xff] %v362
      %365 = vst [vmem:[#allocation2 + $0x8] sm:$0xff] %v363
      // Predicated region
      $region45: #{ortholog_metric_forward.1} parent=39 // pred_check
        %p366 = pneg %p274
      $region46: #{ortholog_metric_forward.1} parent=39 // pred_check_branch
        %368 = sbr.rel (%p366) target = $region48
      $region47: #{ortholog_metric_forward.1} parent=39 // pred_region
        %v369 = vld [vmem:[%s2] sm:$0x7]
        %v370 = vld [vmem:[%s4] sm:$0x7]
        %v371 = vld [vmem:[#allocation2] sm:$0xff]
        %v372 = vld [vmem:[#allocation2 + $0x8] sm:$0xff]
        %v373 = vlaneseq
        %v374 = vshrl.u32 %v373, 7
        %v375 = vsub.s32 0, %v374
        %v376 = vrot.slane %v369, %v375
        %v377 = vadd.f32 %v371, %v376
        %v378 = vadd.f32 %v372, %v376
        %379 = vadd.xlane.f32.xlu0 %v377
        %v380 = vpop.xlane.xlu0 %379
        %381 = vadd.xlane.f32.xlu0 %v378
        %v382 = vpop.xlane.xlu0 %381
        %v383 = vmul.f32 %v380, 0.03125
        %v384 = vmul.f32 %v382, 0.03125
        %v385 = vmul.f32 %v377, %v377
        %v386 = vmul.f32 %v378, %v378
        %387 = vadd.xlane.f32.xlu0 %v385
        %v388 = vpop.xlane.xlu0 %387
        %389 = vadd.xlane.f32.xlu0 %v386
        %v390 = vpop.xlane.xlu0 %389
        %v391 = vmul.f32 %v388, 0.03125
        %v392 = vmul.f32 %v390, 0.03125
        %v393 = vmul.f32 %v383, %v383
        %v394 = vmul.f32 %v384, %v384
        %v395 = vsub.f32 %v391, %v393
        %v396 = vsub.f32 %v392, %v394
        %v397 = vmax.f32 %v395, 0.0
        %v398 = vmax.f32 %v396, 0.0
        %v399 = vadd.f32 %v397, 1e-05
        %v400 = vadd.f32 %v398, 1e-05
        %v401 = vrsqrt.pop %v399
        %v402 = vrsqrt.pop %v400
        %v403 = vsub.f32 %v377, %v383
        %v404 = vsub.f32 %v378, %v384
        %v405 = vmul.f32 %v403, %v401
        %v406 = vmul.f32 %v404, %v402
        %v407 = vlaneseq
        %v408 = vshrl.u32 %v407, 7
        %v409 = vsub.s32 1, %v408
        %v410 = vrot.slane %v369, %v409
        %v411 = vmul.f32 %v405, %v410
        %v412 = vmul.f32 %v406, %v410
        %v413 = vlaneseq
        %v414 = vshrl.u32 %v413, 7
        %v415 = vsub.s32 2, %v414
        %v416 = vrot.slane %v369, %v415
        %v417 = vadd.f32 %v411, %v416
        %v418 = vadd.f32 %v412, %v416
        %v419 = vmax.f32 %v417, 0.0
        %v420 = vmax.f32 %v418, 0.0
        %v421 = vpack.c.bf16 %v420, %v419
        %v422 = vld [vmem:[%s3] sm:$0xf]
        %v423 = vld [vmem:[%s3 + $0x4] sm:$0xf]
        %v424 = vld [vmem:[%s3 + $0x8] sm:$0xf]
        %v425 = vld [vmem:[%s3 + $0xc] sm:$0xf]
        %v426 = vld [vmem:[%s3 + $0x10] sm:$0xf]
        %v427 = vld [vmem:[%s3 + $0x14] sm:$0xf]
        %v428 = vld [vmem:[%s3 + $0x18] sm:$0xf]
        %v429 = vld [vmem:[%s3 + $0x1c] sm:$0xf]
        %v430 = vld [vmem:[%s3 + $0x20] sm:$0xf]
        %v431 = vld [vmem:[%s3 + $0x24] sm:$0xf]
        %v432 = vld [vmem:[%s3 + $0x28] sm:$0xf]
        %v433 = vld [vmem:[%s3 + $0x2c] sm:$0xf]
        %v434 = vld [vmem:[%s3 + $0x30] sm:$0xf]
        %v435 = vld [vmem:[%s3 + $0x34] sm:$0xf]
        %v436 = vld [vmem:[%s3 + $0x38] sm:$0xf]
        %v437 = vld [vmem:[%s3 + $0x3c] sm:$0xf]
        %v438 = vlaneseq
        %v439 = vshrl.u32 %v438, 7
        %v440 = vsub.s32 0, %v439
        %v441 = vrot.slane %v370, %v440
        %v458 = vunpack.c.l.b16 %v422
        %v459 = vunpack.c.l.b16 %v423
        %v460 = vunpack.c.l.b16 %v424
        %v461 = vunpack.c.l.b16 %v425
        %v462 = vunpack.c.l.b16 %v426
        %v463 = vunpack.c.l.b16 %v427
        %v464 = vunpack.c.l.b16 %v428
        %v465 = vunpack.c.l.b16 %v429
        %v466 = vunpack.c.l.b16 %v430
        %v467 = vunpack.c.l.b16 %v431
        %v468 = vunpack.c.l.b16 %v432
        %v469 = vunpack.c.l.b16 %v433
        %v470 = vunpack.c.l.b16 %v434
        %v471 = vunpack.c.l.b16 %v435
        %v472 = vunpack.c.l.b16 %v436
        %v473 = vunpack.c.l.b16 %v437
        %v474 = vpack.c.b16 %v459, %v458
        %v475 = vpack.c.b16 %v461, %v460
        %v476 = vpack.c.b16 %v463, %v462
        %v477 = vpack.c.b16 %v465, %v464
        %v478 = vpack.c.b16 %v467, %v466
        %v479 = vpack.c.b16 %v469, %v468
        %v480 = vpack.c.b16 %v471, %v470
        %v481 = vpack.c.b16 %v473, %v472
        %490 = vmatprep.subr.bf16.mxu0 0
        %491 = vmatpush1.bf16.msra.mxu0 %v474
        %492 = vmatprep.subr.bf16.mxu0 0
        %493 = vmatpush1.bf16.msra.mxu0 %v475
        %494 = vmatprep.subr.bf16.mxu0 0
        %495 = vmatpush1.bf16.msra.mxu0 %v476
        %496 = vmatprep.subr.bf16.mxu0 0
        %497 = vmatpush1.bf16.msra.mxu0 %v477
        %498 = vmatprep.subr.bf16.mxu0 0
        %499 = vmatpush1.bf16.msra.mxu0 %v478
        %500 = vmatprep.subr.bf16.mxu0 0
        %501 = vmatpush1.bf16.msra.mxu0 %v479
        %502 = vmatprep.subr.bf16.mxu0 0
        %503 = vmatpush1.bf16.msra.mxu0 %v480
        %504 = vmatprep.subr.bf16.mxu0 0
        %505 = vmatpush1.bf16.msra.mxu0 %v481
        %506 = vmatprep.subr.bf16.mxu0 0
        %507 = vmatpush1.bf16.msra.mxu0 0
        %508 = vmatprep.subr.bf16.mxu0 0
        %509 = vmatpush1.bf16.msra.mxu0 0
        %510 = vmatprep.subr.bf16.mxu0 0
        %511 = vmatpush1.bf16.msra.mxu0 0
        %512 = vmatprep.subr.bf16.mxu0 0
        %513 = vmatpush1.bf16.msra.mxu0 0
        %514 = vmatprep.subr.bf16.mxu0 0
        %515 = vmatpush1.bf16.msra.mxu0 0
        %516 = vmatprep.subr.bf16.mxu0 0
        %517 = vmatpush1.bf16.msra.mxu0 0
        %518 = vmatprep.subr.bf16.mxu0 0
        %519 = vmatpush1.bf16.msra.mxu0 0
        %520 = vmatprep.subr.bf16.mxu0 0
        %521 = vmatpush1.bf16.msra.mxu0 0
        %522 = vmatprep.mubr.bf16.mxu0 0
        %523 = vmatmul.mubr.bf16.gmra.mrb[0].mxu0 %v421
        %v524 = vpop.f32.mrb[0].mxu0
        %v525 = vadd.f32 %v441, %v524
        %v526 = vpop.f32.mrb[0].mxu0
        %v527 = vpop.f32.mrb[0].mxu0
        %v528 = vadd.f32 %v441, %v527
        %v529 = vpop.f32.mrb[0].mxu0
        %530 = vdwg.mxu0
        %531 = vadd.xlane.f32.xlu0 %v525
        %v532 = vpop.xlane.xlu0 %531
        %533 = vadd.xlane.f32.xlu0 %v528
        %v534 = vpop.xlane.xlu0 %533
        %v535 = vmul.f32 %v532, 0.03125
        %v536 = vmul.f32 %v534, 0.03125
        %v537 = vmul.f32 %v525, %v525
        %v538 = vmul.f32 %v528, %v528
        %539 = vadd.xlane.f32.xlu0 %v537
        %v540 = vpop.xlane.xlu0 %539
        %541 = vadd.xlane.f32.xlu0 %v538
        %v542 = vpop.xlane.xlu0 %541
        %v543 = vmul.f32 %v540, 0.03125
        %v544 = vmul.f32 %v542, 0.03125
        %v545 = vmul.f32 %v535, %v535
        %v546 = vmul.f32 %v536, %v536
        %v547 = vsub.f32 %v543, %v545
        %v548 = vsub.f32 %v544, %v546
        %v549 = vmax.f32 %v547, 0.0
        %v550 = vmax.f32 %v548, 0.0
        %v551 = vadd.f32 %v549, 1e-05
        %v552 = vadd.f32 %v550, 1e-05
        %v553 = vrsqrt.pop %v551
        %v554 = vrsqrt.pop %v552
        %v555 = vsub.f32 %v525, %v535
        %v556 = vsub.f32 %v528, %v536
        %v557 = vmul.f32 %v555, %v553
        %v558 = vmul.f32 %v556, %v554
        %v559 = vlaneseq
        %v560 = vshrl.u32 %v559, 7
        %v561 = vsub.s32 1, %v560
        %v562 = vrot.slane %v370, %v561
        %v563 = vmul.f32 %v557, %v562
        %v564 = vmul.f32 %v558, %v562
        %v565 = vlaneseq
        %v566 = vshrl.u32 %v565, 7
        %v567 = vsub.s32 2, %v566
        %v568 = vrot.slane %v370, %v567
        %v569 = vadd.f32 %v563, %v568
        %v570 = vadd.f32 %v564, %v568
        %v571 = vmax.f32 %v569, 0.0
        %v572 = vmax.f32 %v570, 0.0
        %573 = vst [vmem:[%s271] sm:$0xff] %v571
        %574 = vst [vmem:[%s271 + $0x8] sm:$0xff] %v572
      $region48: #{ortholog_metric_forward.1} parent=39 // pred_fallthru
        _
      %s575 = smul.u32 2, %s20
      %p576 = scmp.lt.s32.totalorder %s575, 7
      %s577 = scalar_select %p576, %s575, 7
      %s578 = smul.addr %s577, 8
      %s579 = scalar_lea.vmem %s5, %s578
      // Predicated region
      $region49: #{ortholog_metric_forward.1} parent=39 // pred_check
        %p580 = pneg %p163
      $region50: #{ortholog_metric_forward.1} parent=39 // pred_check_branch
        %582 = sbr.rel (%p580) target = $region52
      $region51: #{ortholog_metric_forward.1} parent=39 // pred_region
        %s583 = smul.u32 2, %s20
      $region52: #{ortholog_metric_forward.1} parent=39 // pred_fallthru
        _
    $region40: #{ortholog_metric_forward.1} parent=5 // pred_fallthru
      _
    %p584 = scmp.le.s32.totalorder 2, %s11
    // Predicated region
    $region53: #{ortholog_metric_forward.1} parent=5 // pred_check
      %p585 = pneg %p584
    $region54: #{ortholog_metric_forward.1} parent=5 // pred_check_branch
      %587 = sbr.rel (%p585) target = $region56
    $region55: #{ortholog_metric_forward.1} parent=5 // pred_region
      %s588 = ssub.s32 %s11, 2
      // Predicated region
      $region57: #{ortholog_metric_forward.1} parent=55 // pred_check
        %p589 = pneg %p169
      $region58: #{ortholog_metric_forward.1} parent=55 // pred_check_branch
        %591 = sbr.rel (%p589) target = $region60
      $region59: #{ortholog_metric_forward.1} parent=55 // pred_region
        %s592 = smul.u32 2, %s22
        %p593 = scmp.lt.s32.totalorder %s592, 7
        %s594 = scalar_select %p593, %s592, 7
        %s595 = smul.addr %s594, 8
        %s596 = scalar_lea.vmem %s5, %s595
      $region60: #{ortholog_metric_forward.1} parent=55 // pred_fallthru
        _
    $region56: #{ortholog_metric_forward.1} parent=5 // pred_fallthru
      _
  $region6: #{ortholog_metric_forward.1} parent=0 // loop_footer
    %s15 = sadd.s32 1, %s11
  $region7: #{ortholog_metric_forward.1} parent=0 // loop_footer_branch
    %10 = sbr.rel target = $region3
  $region8: #{ortholog_metric_forward.1} parent=0 // loop_exit
    _

</llo_original>
